<compile_context>
chip_gen: v7x
topology: tpu7x:2x2x1
jax: 0.10.0
libtpu: 0.0.40
codegen_flags: <defaults>
</compile_context>

<pallas_src>
import jax
import jax.numpy as jnp
from jax.experimental import pallas as pl
from jax.experimental.pallas import tpu as pltpu


_TRANS_B = (((1,), (1,)), ((), ()))   # contract both operands on their last dim


def gabmil_kernel(x_ref, mask_ref, w_ref, b_ref, ww_ref, wc_ref,
                  a_out_ref, y_out_ref, c_sc):
    i = pl.program_id(0)
    d = ww_ref.shape[1]

    x_f32 = x_ref[...]                                   # (TILE_N, L) f32
    x_bf = x_f32.astype(jnp.bfloat16)

    # Fused gated-attention projection: one MXU pass over [Wv | Wu] (bf16 in, f32 acc).
    p = jnp.dot(x_bf, w_ref[...], preferred_element_type=jnp.float32) + b_ref[0:1, :]
    av = jnp.tanh(p[:, :d])                              # attention_V   (TILE_N, D)
    au = jax.nn.sigmoid(p[:, d:])                        # attention_U   (TILE_N, D)
    gated = av * au                                      # (TILE_N, D) f32

    bw = b_ref[1:2, 0:1]                                 # scalars folded into bias operand
    bc = b_ref[1:2, 1:2]

    # Attention logits, lane-dense straight off the MXU:
    #   ww (8, D) . gated^T -> (8, TILE_N); only sublane 0 is real (rows 1..7 zero).
    logit = jax.lax.dot_general(ww_ref[...], gated, _TRANS_B,
                                preferred_element_type=jnp.float32)[0:1, :]
    logit = logit + bw + mask_ref[...]                   # + bw; -1e30 on padded lanes

    # Classifier dot in f32 (keeps Y_prob close to the f32 torch reference):
    #   wc (8, L) . x^T -> (8, TILE_N); sublane 0 real.
    c_row = jax.lax.dot_general(wc_ref[...], x_f32, _TRANS_B,
                                preferred_element_type=jnp.float32)[0:1, :]

    # Stage this block's raw logits / classifier dots (lane-dense, unmasked stores).
    a_out_ref[pl.ds(i, 1), :] = logit
    c_sc[pl.ds(i, 1), :] = c_row

    # Finalize once the whole bag has been seen: softmax over instances + classifier.
    @pl.when(i == pl.num_programs(0) - 1)
    def _finalize():
        raw = a_out_ref[...]                             # (n_blocks, TILE_N) logits
        m = jnp.max(jnp.max(raw, axis=1, keepdims=True), axis=0, keepdims=True)
        e = jnp.exp(raw - m)                             # padded lanes -> exactly 0
        denom = jnp.sum(jnp.sum(e, axis=1, keepdims=True), axis=0, keepdims=True)
        a_out_ref[...] = e * pl.reciprocal(denom, approx=True)

        # (A @ H) @ wc + bc == sum_n A_n * (x_n . wc) + bc   (exact by linearity)
        wsum = jnp.sum(jnp.sum(e * c_sc[...], axis=1, keepdims=True),
                       axis=0, keepdims=True)
        y_prob = jax.nn.sigmoid(wsum / denom + bc)       # exact divide for the scalar
        y_hat = (y_prob >= 0.5).astype(jnp.float32)
        lane = jax.lax.broadcasted_iota(jnp.int32, y_out_ref.shape, 1)
        y_out_ref[...] = jnp.where(lane == 0, y_prob,
                                   jnp.where(lane == 1, y_hat, 0.0))


def pack_params(params):
    """One-time packing of module parameters into MXU/VMEM-friendly operands."""
    wv, bv, wu, bu, ww, bw, wc, bc = params
    l, d = wv.shape
    w = jnp.concatenate([wv, wu], axis=1).astype(jnp.bfloat16)        # (L, 2D) bf16
    b2 = jnp.zeros((2, 2 * d), jnp.float32)
    b2 = b2.at[0, :d].set(bv[0]).at[0, d:].set(bu[0])                 # row 0: [bv | bu]
    b2 = b2.at[1, 0].set(bw[0, 0]).at[1, 1].set(bc[0, 0])             # row 1: bw, bc
    ww8 = jnp.zeros((8, d), jnp.float32).at[0].set(ww[0])             # ww in sublane 0
    wc8 = jnp.zeros((8, l), jnp.float32).at[0].set(wc[:, 0])          # wc^T in sublane 0
    return {"w": w, "b2": b2, "ww8": ww8, "wc8": wc8}


def gabmil_forward(x, packed, *, tile_n=512):
    """x: (1, N, L) float32, packed: pack_params(...). Returns (Y_prob, Y_hat, A)."""
    x2 = x[0]                                   # squeeze(0)
    n, l = x2.shape
    d = packed["ww8"].shape[1]

    # Lane-aligned instance tile, clamped to the (padded) bag size.
    tile_n = max(128, (tile_n // 128) * 128)
    tile_n = min(tile_n, pl.cdiv(n, 128) * 128)
    n_blocks = pl.cdiv(n, tile_n)
    n_pad = n_blocks * tile_n

    x_pad = x2 if n_pad == n else jnp.pad(x2, ((0, n_pad - n), (0, 0)))
    # Additive softmax mask: 0 for real instances, -1e30 for padding.
    mask = jnp.where(jnp.arange(n_pad) < n, 0.0, -1e30).astype(jnp.float32)
    mask = mask.reshape(1, n_pad)

    # Explicit VMEM budget (2x-buffered x blocks + resident weights + temporaries),
    # clamped so a v6e-sized tile never demands more than v7x can give.
    est = (2 * tile_n * l * 4 + l * 2 * d * 2 + 3 * tile_n * 2 * d * 4
           + 3 * n_pad * 4 + (2 << 20))
    vmem_limit = int(min(max(2 * est, 16 << 20), 48 << 20))

    a_raw, y_row = pl.pallas_call(
        gabmil_kernel,
        grid=(n_blocks,),
        in_specs=[
            pl.BlockSpec((tile_n, l), lambda i: (i, 0)),        # x: streamed / pipelined
            pl.BlockSpec((1, tile_n), lambda i: (0, i)),        # softmax pad mask
            pl.BlockSpec((l, 2 * d), lambda i: (0, 0)),         # [Wv | Wu]      (resident)
            pl.BlockSpec((2, 2 * d), lambda i: (0, 0)),         # [bv|bu];[bw,bc](resident)
            pl.BlockSpec((8, d), lambda i: (0, 0)),             # ww row         (resident)
            pl.BlockSpec((8, l), lambda i: (0, 0)),             # wc row         (resident)
        ],
        out_specs=[
            pl.BlockSpec((n_blocks, tile_n), lambda i: (0, 0)),  # attention (resident)
            pl.BlockSpec((1, 128), lambda i: (0, 0)),            # [Y_prob, Y_hat, 0...]
        ],
        out_shape=(jax.ShapeDtypeStruct((n_blocks, tile_n), jnp.float32),
                   jax.ShapeDtypeStruct((1, 128), jnp.float32)),
        scratch_shapes=[pltpu.VMEM((n_blocks, tile_n), jnp.float32)],
        compiler_params=pltpu.CompilerParams(
            dimension_semantics=("arbitrary",),
            vmem_limit_bytes=vmem_limit),
    )(x_pad, mask, packed["w"], packed["b2"], packed["ww8"], packed["wc8"])

    a = a_raw.reshape(1, n_pad)[:, :n]          # lane-dense row, already "transposed"
    y_prob = y_row[:, 0:1]
    y_hat = y_row[:, 1:2]
    return y_prob, y_hat, a


def gabmil_reference(x, params):
    """Plain-JAX reference of the torch forward (H := bag features x)."""
    wv, bv, wu, bu, ww, bw, wc, bc = params
    h = x[0]
    av = jnp.tanh(h @ wv + bv)
    au = jax.nn.sigmoid(h @ wu + bu)
    a = (av * au) @ ww.T + bw                   # (N, 1)
    a = jax.nn.softmax(a.T, axis=1)             # (1, N)
    m = a @ h                                   # (1, L)
    y_prob = jax.nn.sigmoid(m @ wc + bc)        # (1, 1)
    y_hat = (y_prob >= 0.5).astype(jnp.float32)
    return y_prob, y_hat, a


def init_params(key, L, D):
    """Deterministic synthetic parameters (same effective shapes as the nn.Module)."""
    ks = jax.random.split(key, 8)
    s = 0.05
    wv = s * jax.random.normal(ks[0], (L, D), jnp.float32)   # attention_V weight^T
    bv = s * jax.random.normal(ks[1], (1, D), jnp.float32)
    wu = s * jax.random.normal(ks[2], (L, D), jnp.float32)   # attention_U weight^T
    bu = s * jax.random.normal(ks[3], (1, D), jnp.float32)
    ww = s * jax.random.normal(ks[4], (1, D), jnp.float32)   # attention_weights (K=1)
    bw = s * jax.random.normal(ks[5], (1, 1), jnp.float32)
    wc = s * jax.random.normal(ks[6], (L, 1), jnp.float32)   # classifier weight^T
    bc = s * jax.random.normal(ks[7], (1, 1), jnp.float32)
    return (wv, bv, wu, bu, ww, bw, wc, bc)


if __name__ == "__main__":
    # Small shapes: bag of N=8 instances, input_size L=64, D fixed at 128 by the module.
    N, L, D = 8, 64, 128
    key = jax.random.PRNGKey(0)
    kx, kp = jax.random.split(key)
    x = jax.random.normal(kx, (1, N, L), jnp.float32)
    params = init_params(kp, L, D)
    packed = pack_params(params)    # hoisted one-time weight packing (perf review)

    y_prob, y_hat, A = jax.jit(gabmil_forward)(x, packed)
    jax.block_until_ready((y_prob, y_hat, A))

    yp_ref, yh_ref, a_ref = gabmil_reference(x, params)

    assert y_prob.shape == (1, 1) and y_hat.shape == (1, 1) and A.shape == (1, N)
    assert bool(jnp.isfinite(y_prob).all()) and bool(jnp.isfinite(A).all())
    assert abs(float(A.sum()) - 1.0) < 1e-2                  # softmax weights sum to ~1
    assert float(jnp.max(jnp.abs(A - a_ref))) < 5e-2         # bf16-MXU tolerance
    assert float(jnp.abs(y_prob - yp_ref).max()) < 5e-2
    assert float(y_hat[0, 0]) in (0.0, 1.0)
    print("KERNEL_OK")
</pallas_src>

<mosaic_0001>
module attributes {stable_mosaic.version = 11 : i64} {
  func.func @gabmil_kernel(%arg0: i32, %arg1: memref<128x64xf32, #tpu.memory_space<vmem>>, %arg2: memref<1x128xf32, #tpu.memory_space<vmem>>, %arg3: memref<64x256xbf16, #tpu.memory_space<vmem>>, %arg4: memref<2x256xf32, #tpu.memory_space<vmem>>, %arg5: memref<8x128xf32, #tpu.memory_space<vmem>>, %arg6: memref<8x64xf32, #tpu.memory_space<vmem>>, %arg7: memref<1x128xf32, #tpu.memory_space<vmem>>, %arg8: memref<1x128xf32, #tpu.memory_space<vmem>>, %arg9: memref<1x128xf32, #tpu.memory_space<vmem>>) attributes {dimension_semantics = [#tpu.dimension_semantics<arbitrary>], iteration_bounds = array<i64: 1>, scalar_prefetch = 0 : i64, scratch_operands = 1 : i64, tpu.core_type = #tpu.core_type<tc>, window_params = [{transform_indices = @transform_0, window_bounds = array<i64: 128, 64>}, {transform_indices = @transform_1, window_bounds = array<i64: 1, 128>}, {pipeline_mode = #tpu.pipeline_mode<synchronous>, transform_indices = @transform_2, window_bounds = array<i64: 64, 256>}, {pipeline_mode = #tpu.pipeline_mode<synchronous>, transform_indices = @transform_3, window_bounds = array<i64: 2, 256>}, {pipeline_mode = #tpu.pipeline_mode<synchronous>, transform_indices = @transform_4, window_bounds = array<i64: 8, 128>}, {pipeline_mode = #tpu.pipeline_mode<synchronous>, transform_indices = @transform_5, window_bounds = array<i64: 8, 64>}, {pipeline_mode = #tpu.pipeline_mode<synchronous>, transform_indices = @transform_6, window_bounds = array<i64: 1, 128>}, {pipeline_mode = #tpu.pipeline_mode<synchronous>, transform_indices = @transform_7, window_bounds = array<i64: 1, 128>}]} {
    %c0 = arith.constant 0 : index
    %c0_0 = arith.constant 0 : index
    %0 = vector.load %arg1[%c0, %c0_0] : memref<128x64xf32, #tpu.memory_space<vmem>>, vector<128x64xf32>
    %1 = arith.truncf %0 : vector<128x64xf32> to vector<128x64xbf16>
    %c0_1 = arith.constant 0 : index
    %c0_2 = arith.constant 0 : index
    %2 = vector.load %arg3[%c0_1, %c0_2] : memref<64x256xbf16, #tpu.memory_space<vmem>>, vector<64x256xbf16>
    %cst = arith.constant dense<0.000000e+00> : vector<128x256xf32>
    %3 = tpu.matmul %1, %2, %cst {dimension_numbers = #tpu.dot_dimension_numbers<[1], [0], [0], [1], [0, 0, 1, 1], [], []>} : vector<128x64xbf16>, vector<64x256xbf16>, vector<128x256xf32> -> vector<128x256xf32>
    %c0_3 = arith.constant 0 : index
    %c0_4 = arith.constant 0 : index
    %4 = vector.load %arg4[%c0_3, %c0_4] : memref<2x256xf32, #tpu.memory_space<vmem>>, vector<1x256xf32>
    %5 = vector.broadcast %4 : vector<1x256xf32> to vector<128x256xf32>
    %6 = arith.addf %3, %5 : vector<128x256xf32>
    %7 = vector.extract_strided_slice %6 {offsets = [0, 0], sizes = [128, 128], strides = [1, 1]} : vector<128x256xf32> to vector<128x128xf32>
    %8 = math.tanh %7 : vector<128x128xf32>
    %9 = vector.extract_strided_slice %6 {offsets = [0, 128], sizes = [128, 128], strides = [1, 1]} : vector<128x256xf32> to vector<128x128xf32>
    %10 = arith.negf %9 : vector<128x128xf32>
    %11 = math.exp %10 : vector<128x128xf32>
    %cst_5 = arith.constant 1.000000e+00 : f32
    %12 = vector.broadcast %cst_5 : f32 to vector<128x128xf32>
    %13 = arith.addf %12, %11 : vector<128x128xf32>
    %14 = arith.divf %12, %13 : vector<128x128xf32>
    %15 = arith.mulf %8, %14 : vector<128x128xf32>
    %c1 = arith.constant 1 : index
    %c0_6 = arith.constant 0 : index
    %16 = vector.load %arg4[%c1, %c0_6] : memref<2x256xf32, #tpu.memory_space<vmem>>, vector<1x1xf32>
    %c1_7 = arith.constant 1 : index
    %c1_8 = arith.constant 1 : index
    %17 = vector.load %arg4[%c1_7, %c1_8] : memref<2x256xf32, #tpu.memory_space<vmem>>, vector<1x1xf32>
    %c0_9 = arith.constant 0 : index
    %c0_10 = arith.constant 0 : index
    %18 = vector.load %arg5[%c0_9, %c0_10] : memref<8x128xf32, #tpu.memory_space<vmem>>, vector<8x128xf32>
    %cst_11 = arith.constant dense<0.000000e+00> : vector<8x128xf32>
    %19 = tpu.matmul %18, %15, %cst_11 {dimension_numbers = #tpu.dot_dimension_numbers<[1], [1], [0], [0], [0, 0, 1, 0], [], []>} : vector<8x128xf32>, vector<128x128xf32>, vector<8x128xf32> -> vector<8x128xf32>
    %20 = vector.extract_strided_slice %19 {offsets = [0, 0], sizes = [1, 128], strides = [1, 1]} : vector<8x128xf32> to vector<1x128xf32>
    %21 = vector.broadcast %16 : vector<1x1xf32> to vector<1x128xf32>
    %22 = arith.addf %20, %21 : vector<1x128xf32>
    %c0_12 = arith.constant 0 : index
    %c0_13 = arith.constant 0 : index
    %23 = vector.load %arg2[%c0_12, %c0_13] : memref<1x128xf32, #tpu.memory_space<vmem>>, vector<1x128xf32>
    %24 = arith.addf %22, %23 : vector<1x128xf32>
    %c0_14 = arith.constant 0 : index
    %c0_15 = arith.constant 0 : index
    %25 = vector.load %arg6[%c0_14, %c0_15] : memref<8x64xf32, #tpu.memory_space<vmem>>, vector<8x64xf32>
    %cst_16 = arith.constant dense<0.000000e+00> : vector<8x128xf32>
    %26 = tpu.matmul %25, %0, %cst_16 {dimension_numbers = #tpu.dot_dimension_numbers<[1], [1], [0], [0], [0, 0, 1, 0], [], []>} : vector<8x64xf32>, vector<128x64xf32>, vector<8x128xf32> -> vector<8x128xf32>
    %27 = vector.extract_strided_slice %26 {offsets = [0, 0], sizes = [1, 128], strides = [1, 1]} : vector<8x128xf32> to vector<1x128xf32>
    %28 = arith.index_cast %arg0 : i32 to index
    %c0_17 = arith.constant 0 : index
    %29 = vector.load %arg7[%28, %c0_17] : memref<1x128xf32, #tpu.memory_space<vmem>>, vector<1x128xf32>
    tpu.vector_store %arg7[%28, %c0_17], %24 {strides = array<i32>} : memref<1x128xf32, #tpu.memory_space<vmem>>, vector<1x128xf32>,
    %30 = arith.index_cast %arg0 : i32 to index
    %c0_18 = arith.constant 0 : index
    %31 = vector.load %arg9[%30, %c0_18] : memref<1x128xf32, #tpu.memory_space<vmem>>, vector<1x128xf32>
    tpu.vector_store %arg9[%30, %c0_18], %27 {strides = array<i32>} : memref<1x128xf32, #tpu.memory_space<vmem>>, vector<1x128xf32>,
    %c0_i32 = arith.constant 0 : i32
    %32 = arith.cmpi eq, %arg0, %c0_i32 : i32
    %33 = arith.extui %32 : i1 to i32
    %c0_i32_19 = arith.constant 0 : i32
    %34 = arith.cmpi ne, %33, %c0_i32_19 : i32
    scf.if %34 {
      %c0_20 = arith.constant 0 : index
      %c0_21 = arith.constant 0 : index
      %35 = vector.load %arg7[%c0_20, %c0_21] : memref<1x128xf32, #tpu.memory_space<vmem>>, vector<1x128xf32>
      %cst_22 = arith.constant dense<0xFF800000> : vector<1xf32>
      %36 = vector.multi_reduction <maximumf>, %35, %cst_22 [1] : vector<1x128xf32> to vector<1xf32>
      %37 = vector.shape_cast %36 : vector<1xf32> to vector<1x1xf32>
      %cst_23 = arith.constant dense<0xFF800000> : vector<1xf32>
      %38 = vector.multi_reduction <maximumf>, %37, %cst_23 [0] : vector<1x1xf32> to vector<1xf32>
      %39 = vector.shape_cast %38 : vector<1xf32> to vector<1x1xf32>
      %40 = vector.broadcast %39 : vector<1x1xf32> to vector<1x128xf32>
      %41 = arith.subf %35, %40 : vector<1x128xf32>
      %42 = math.exp %41 : vector<1x128xf32>
      %cst_24 = arith.constant dense<0.000000e+00> : vector<1xf32>
      %43 = vector.multi_reduction <add>, %42, %cst_24 [1] : vector<1x128xf32> to vector<1xf32>
      %44 = vector.shape_cast %43 : vector<1xf32> to vector<1x1xf32>
      %cst_25 = arith.constant dense<0.000000e+00> : vector<1xf32>
      %45 = vector.multi_reduction <add>, %44, %cst_25 [0] : vector<1x1xf32> to vector<1xf32>
      %46 = vector.shape_cast %45 : vector<1xf32> to vector<1x1xf32>
      %47 = tpu.reciprocal %46 {approx = true} : vector<1x1xf32> -> vector<1x1xf32>
      %48 = vector.broadcast %47 : vector<1x1xf32> to vector<1x128xf32>
      %49 = arith.mulf %42, %48 : vector<1x128xf32>
      %c0_26 = arith.constant 0 : index
      %c0_27 = arith.constant 0 : index
      %50 = vector.load %arg7[%c0_26, %c0_27] : memref<1x128xf32, #tpu.memory_space<vmem>>, vector<1x128xf32>
      tpu.vector_store %arg7[%c0_26, %c0_27], %49 {strides = array<i32>} : memref<1x128xf32, #tpu.memory_space<vmem>>, vector<1x128xf32>,
      %c0_28 = arith.constant 0 : index
      %c0_29 = arith.constant 0 : index
      %51 = vector.load %arg9[%c0_28, %c0_29] : memref<1x128xf32, #tpu.memory_space<vmem>>, vector<1x128xf32>
      %52 = arith.mulf %42, %51 : vector<1x128xf32>
      %cst_30 = arith.constant dense<0.000000e+00> : vector<1xf32>
      %53 = vector.multi_reduction <add>, %52, %cst_30 [1] : vector<1x128xf32> to vector<1xf32>
      %54 = vector.shape_cast %53 : vector<1xf32> to vector<1x1xf32>
      %cst_31 = arith.constant dense<0.000000e+00> : vector<1xf32>
      %55 = vector.multi_reduction <add>, %54, %cst_31 [0] : vector<1x1xf32> to vector<1xf32>
      %56 = vector.shape_cast %55 : vector<1xf32> to vector<1x1xf32>
      %57 = arith.divf %56, %46 : vector<1x1xf32>
      %58 = arith.addf %57, %17 : vector<1x1xf32>
      %59 = arith.negf %58 : vector<1x1xf32>
      %60 = math.exp %59 : vector<1x1xf32>
      %cst_32 = arith.constant 1.000000e+00 : f32
      %61 = vector.broadcast %cst_32 : f32 to vector<1x1xf32>
      %62 = arith.addf %61, %60 : vector<1x1xf32>
      %63 = arith.divf %61, %62 : vector<1x1xf32>
      %cst_33 = arith.constant 5.000000e-01 : f32
      %64 = vector.broadcast %cst_33 : f32 to vector<1x1xf32>
      %65 = arith.cmpf oge, %63, %64 : vector<1x1xf32>
      %66 = arith.extui %65 : vector<1x1xi1> to vector<1x1xi32>
      %67 = arith.sitofp %66 : vector<1x1xi32> to vector<1x1xf32>
      %68 = tpu.iota {dimensions = array<i32: 1>} : vector<1x128xi32>
      %c0_i32_34 = arith.constant 0 : i32
      %69 = vector.broadcast %c0_i32_34 : i32 to vector<1x128xi32>
      %70 = arith.cmpi eq, %68, %69 : vector<1x128xi32>
      %c1_i32 = arith.constant 1 : i32
      %71 = vector.broadcast %c1_i32 : i32 to vector<1x128xi32>
      %72 = arith.cmpi eq, %68, %71 : vector<1x128xi32>
      %cst_35 = arith.constant 0.000000e+00 : f32
      %73 = vector.shape_cast %67 : vector<1x1xf32> to vector<1x1xf32>
      %74 = vector.broadcast %73 : vector<1x1xf32> to vector<1x128xf32>
      %75 = vector.broadcast %cst_35 : f32 to vector<1x128xf32>
      %76 = arith.select %72, %74, %75 : vector<1x128xi1>, vector<1x128xf32>
      %77 = vector.shape_cast %63 : vector<1x1xf32> to vector<1x1xf32>
      %78 = vector.broadcast %77 : vector<1x1xf32> to vector<1x128xf32>
      %79 = arith.select %70, %78, %76 : vector<1x128xi1>, vector<1x128xf32>
      %c0_36 = arith.constant 0 : index
      %c0_37 = arith.constant 0 : index
      %80 = vector.load %arg8[%c0_36, %c0_37] : memref<1x128xf32, #tpu.memory_space<vmem>>, vector<1x128xf32>
      tpu.vector_store %arg8[%c0_36, %c0_37], %79 {strides = array<i32>} : memref<1x128xf32, #tpu.memory_space<vmem>>, vector<1x128xf32>,
    } else {
    }
    return
  }
  func.func @transform_0(%arg0: i32) -> (i32, i32) {
    %c0_i32 = arith.constant 0 : i32
    %c0_i32_0 = arith.constant 0 : i32
    return %arg0, %c0_i32 : i32, i32
  }
  func.func @transform_1(%arg0: i32) -> (i32, i32) {
    %c0_i32 = arith.constant 0 : i32
    %c0_i32_0 = arith.constant 0 : i32
    return %c0_i32, %arg0 : i32, i32
  }
  func.func @transform_2(%arg0: i32) -> (i32, i32) {
    %c0_i32 = arith.constant 0 : i32
    %c0_i32_0 = arith.constant 0 : i32
    %c0_i32_1 = arith.constant 0 : i32
    return %c0_i32, %c0_i32_0 : i32, i32
  }
  func.func @transform_3(%arg0: i32) -> (i32, i32) {
    %c0_i32 = arith.constant 0 : i32
    %c0_i32_0 = arith.constant 0 : i32
    %c0_i32_1 = arith.constant 0 : i32
    return %c0_i32, %c0_i32_0 : i32, i32
  }
  func.func @transform_4(%arg0: i32) -> (i32, i32) {
    %c0_i32 = arith.constant 0 : i32
    %c0_i32_0 = arith.constant 0 : i32
    %c0_i32_1 = arith.constant 0 : i32
    return %c0_i32, %c0_i32_0 : i32, i32
  }
  func.func @transform_5(%arg0: i32) -> (i32, i32) {
    %c0_i32 = arith.constant 0 : i32
    %c0_i32_0 = arith.constant 0 : i32
    %c0_i32_1 = arith.constant 0 : i32
    return %c0_i32, %c0_i32_0 : i32, i32
  }
  func.func @transform_6(%arg0: i32) -> (i32, i32) {
    %c0_i32 = arith.constant 0 : i32
    %c0_i32_0 = arith.constant 0 : i32
    %c0_i32_1 = arith.constant 0 : i32
    return %c0_i32, %c0_i32_0 : i32, i32
  }
  func.func @transform_7(%arg0: i32) -> (i32, i32) {
    %c0_i32 = arith.constant 0 : i32
    %c0_i32_0 = arith.constant 0 : i32
    %c0_i32_1 = arith.constant 0 : i32
    return %c0_i32, %c0_i32_0 : i32, i32
  }
}

</mosaic_0001>

<llo_original>
// kernel: gabmil_forward.1
$region0: #{gabmil_forward.1}
  #allocation0 [shape = 'u32[]', space=smem, size = 0x4, offset = 0x4, fixed_abs, tag = 'smem constant byte address 0x4 - core index']
  #allocation1 [shape = 'u32[144,128]{1,0:T(1,128)}', space=vmem, size = 0x12000, scoped, tag = 'internal scratch']
  #allocation2 [shape = 'f32[1,128]{1,0:T(1,128)}', space=vmem, size = 0x200, scoped, tag = 'scratch operand']
  %s0 = inlined_call_operand.vmem [shape: f32[128,64], index: 0, kind: input, shape index: {}]
  %s1 = inlined_call_operand.vmem [shape: f32[1,128], index: 1, kind: input, shape index: {}]
  %s2 = inlined_call_operand.vmem [shape: bf16[64,256], index: 2, kind: input, shape index: {}]
  %s3 = inlined_call_operand.vmem [shape: f32[2,256], index: 3, kind: input, shape index: {}]
  %s4 = inlined_call_operand.vmem [shape: f32[8,128], index: 4, kind: input, shape index: {}]
  %s5 = inlined_call_operand.vmem [shape: f32[8,64], index: 5, kind: input, shape index: {}]
  %s6 = inlined_call_operand.hbm [shape: f32[1,128], index: 6, kind: output, shape index: {0}]
  %s7 = inlined_call_operand.vmem [shape: f32[1,128], index: 7, kind: output, shape index: {1}]
  %8 = xla_tuple %s6, %s7
  %s9 = sld [smem:[#allocation0]]
  $region46: #{gabmil_forward.1} parent=0
    _
  %s11 = ssub.s32 1, %s9
  %s12 = scalar_select 0, %s11, %s9
  $region1: #{gabmil_forward.1} parent=0
    #allocation3 [shape = 'u8[512]{0}', space=vmem, size = 0x400, scoped, tag = 'output window, operand 0, single buffered']
    #allocation4 [shape = 's32[1]{0}', space=sflag, size = 0x4, scoped, tag = 'scoped memory for gabmil_forward.1']
    %13 = vsyncpa [#allocation4], 0
    // Predicated region
    $region2: #{gabmil_forward.1} parent=1 // pred_check
      _
    $region3: #{gabmil_forward.1} parent=1 // pred_check_branch
      %15 = sbr.rel (0) target = $region5
    $region4: #{gabmil_forward.1} parent=1 // pred_region
      _
    $region5: #{gabmil_forward.1} parent=1 // pred_fallthru
      _
    // Predicated region
    $region6: #{gabmil_forward.1} parent=1 // pred_check
      _
    $region7: #{gabmil_forward.1} parent=1 // pred_check_branch
      %17 = sbr.rel (0) target = $region9
    $region8: #{gabmil_forward.1} parent=1 // pred_region
      _
    $region9: #{gabmil_forward.1} parent=1 // pred_fallthru
      _
    // Predicated region
    $region10: #{gabmil_forward.1} parent=1 // pred_check
      _
    $region11: #{gabmil_forward.1} parent=1 // pred_check_branch
      %19 = sbr.rel (0) target = $region13
    $region12: #{gabmil_forward.1} parent=1 // pred_region
      _
    $region13: #{gabmil_forward.1} parent=1 // pred_fallthru
      _
    // Predicated region
    $region14: #{gabmil_forward.1} parent=1 // pred_check
      _
    $region15: #{gabmil_forward.1} parent=1 // pred_check_branch
      %21 = sbr.rel (0) target = $region17
    $region16: #{gabmil_forward.1} parent=1 // pred_region
      _
    $region17: #{gabmil_forward.1} parent=1 // pred_fallthru
      _
    // Predicated region
    $region18: #{gabmil_forward.1} parent=1 // pred_check
      _
    $region19: #{gabmil_forward.1} parent=1 // pred_check_branch
      %23 = sbr.rel (0) target = $region21
    $region20: #{gabmil_forward.1} parent=1 // pred_region
      _
    $region21: #{gabmil_forward.1} parent=1 // pred_fallthru
      _
    // Predicated region
    $region22: #{gabmil_forward.1} parent=1 // pred_check
      _
    $region23: #{gabmil_forward.1} parent=1 // pred_check_branch
      %25 = sbr.rel (0) target = $region25
    $region24: #{gabmil_forward.1} parent=1 // pred_region
      _
    $region25: #{gabmil_forward.1} parent=1 // pred_fallthru
      _
    %v27 = vld [vmem:[%s0] sm:$0xff]
    %v28 = vld [vmem:[%s0 + $0x8] sm:$0xff]
    %v29 = vld [vmem:[%s0 + $0x10] sm:$0xff]
    %v30 = vld [vmem:[%s0 + $0x18] sm:$0xff]
    %v31 = vld [vmem:[%s0 + $0x20] sm:$0xff]
    %v32 = vld [vmem:[%s0 + $0x28] sm:$0xff]
    %v33 = vld [vmem:[%s0 + $0x30] sm:$0xff]
    %v34 = vld [vmem:[%s0 + $0x38] sm:$0xff]
    %v35 = vld [vmem:[%s0 + $0x40] sm:$0xff]
    %v36 = vld [vmem:[%s0 + $0x48] sm:$0xff]
    %v37 = vld [vmem:[%s0 + $0x50] sm:$0xff]
    %v38 = vld [vmem:[%s0 + $0x58] sm:$0xff]
    %v39 = vld [vmem:[%s0 + $0x60] sm:$0xff]
    %v40 = vld [vmem:[%s0 + $0x68] sm:$0xff]
    %v41 = vld [vmem:[%s0 + $0x70] sm:$0xff]
    %v42 = vld [vmem:[%s0 + $0x78] sm:$0xff]
    %v43 = vpack.c.bf16 %v28, %v27
    %v44 = vpack.c.bf16 %v30, %v29
    %v45 = vpack.c.bf16 %v32, %v31
    %v46 = vpack.c.bf16 %v34, %v33
    %v47 = vpack.c.bf16 %v36, %v35
    %v48 = vpack.c.bf16 %v38, %v37
    %v49 = vpack.c.bf16 %v40, %v39
    %v50 = vpack.c.bf16 %v42, %v41
    %v51 = vld [vmem:[%s2] sm:$0xff]
    %v52 = vld [vmem:[%s2 + $0x8] sm:$0xff]
    %v53 = vld [vmem:[%s2 + $0x10] sm:$0xff]
    %v54 = vld [vmem:[%s2 + $0x18] sm:$0xff]
    %v55 = vld [vmem:[%s2 + $0x20] sm:$0xff]
    %v56 = vld [vmem:[%s2 + $0x28] sm:$0xff]
    %v57 = vld [vmem:[%s2 + $0x30] sm:$0xff]
    %v58 = vld [vmem:[%s2 + $0x38] sm:$0xff]
    %v59 = vld [vmem:[%s3] ss:$2 sm:$0x3]
    %v61 = vlaneseq
    %v62 = vshrl.u32 %v61, 7
    %v63 = vsub.s32 0, %v62
    %v64 = vrot.slane %v59, %v63
    %v65 = vlaneseq
    %v66 = vshrl.u32 %v65, 7
    %v67 = vsub.s32 1, %v66
    %v68 = vrot.slane %v59, %v67
    %v79 = vunpack.c.l.b16 %v51
    %v80 = vunpack.c.h.b16 %v51
    %v81 = vunpack.c.l.b16 %v52
    %v82 = vunpack.c.h.b16 %v52
    %v83 = vunpack.c.l.b16 %v53
    %v84 = vunpack.c.h.b16 %v53
    %v85 = vunpack.c.l.b16 %v54
    %v86 = vunpack.c.h.b16 %v54
    %v87 = vunpack.c.l.b16 %v55
    %v88 = vunpack.c.h.b16 %v55
    %v89 = vunpack.c.l.b16 %v56
    %v90 = vunpack.c.h.b16 %v56
    %v91 = vunpack.c.l.b16 %v57
    %v92 = vunpack.c.h.b16 %v57
    %v93 = vunpack.c.l.b16 %v58
    %v94 = vunpack.c.h.b16 %v58
    %v95 = vpack.c.b16 %v81, %v79
    %v96 = vpack.c.b16 %v82, %v80
    %v97 = vpack.c.b16 %v85, %v83
    %v98 = vpack.c.b16 %v86, %v84
    %v99 = vpack.c.b16 %v89, %v87
    %v100 = vpack.c.b16 %v90, %v88
    %v101 = vpack.c.b16 %v93, %v91
    %v102 = vpack.c.b16 %v94, %v92
    %vm111 = vcmask 523264
    %v113 = vsel %vm111, %v43, 0
    %v116 = vsel %vm111, %v44, 0
    %v119 = vsel %vm111, %v45, 0
    %v122 = vsel %vm111, %v46, 0
    %v125 = vsel %vm111, %v47, 0
    %v128 = vsel %vm111, %v48, 0
    %v131 = vsel %vm111, %v49, 0
    %v134 = vsel %vm111, %v50, 0
    %136 = vmatprep.subr.bf16.mxu0 %v96
    %137 = vmatpush1.bf16.msra.mxu0 %v95
    %138 = vmatprep.subr.bf16.mxu0 %v98
    %139 = vmatpush1.bf16.msra.mxu0 %v97
    %140 = vmatprep.subr.bf16.mxu0 %v100
    %141 = vmatpush1.bf16.msra.mxu0 %v99
    %142 = vmatprep.subr.bf16.mxu0 %v102
    %143 = vmatpush1.bf16.msra.mxu0 %v101
    %144 = vmatprep.subr.bf16.mxu0 0
    %145 = vmatpush1.bf16.msra.mxu0 0
    %146 = vmatprep.subr.bf16.mxu0 0
    %147 = vmatpush1.bf16.msra.mxu0 0
    %148 = vmatprep.subr.bf16.mxu0 0
    %149 = vmatpush1.bf16.msra.mxu0 0
    %150 = vmatprep.subr.bf16.mxu0 0
    %151 = vmatpush1.bf16.msra.mxu0 0
    %152 = vmatprep.subr.bf16.mxu0 0
    %153 = vmatpush1.bf16.msra.mxu0 0
    %154 = vmatprep.subr.bf16.mxu0 0
    %155 = vmatpush1.bf16.msra.mxu0 0
    %156 = vmatprep.subr.bf16.mxu0 0
    %157 = vmatpush1.bf16.msra.mxu0 0
    %158 = vmatprep.subr.bf16.mxu0 0
    %159 = vmatpush1.bf16.msra.mxu0 0
    %160 = vmatprep.subr.bf16.mxu0 0
    %161 = vmatpush1.bf16.msra.mxu0 0
    %162 = vmatprep.subr.bf16.mxu0 0
    %163 = vmatpush1.bf16.msra.mxu0 0
    %164 = vmatprep.subr.bf16.mxu0 0
    %165 = vmatpush1.bf16.msra.mxu0 0
    %166 = vmatprep.subr.bf16.mxu0 0
    %167 = vmatpush1.bf16.msra.mxu0 0
    %168 = vmatprep.mubr.bf16.mxu0 0
    %169 = vmatmul.mubr.bf16.gmra.mrb[0].mxu0 %v113
    %v170 = vpop.f32.mrb[0].mxu0
    %v171 = vadd.f32 %v64, %v170
    %v172 = vpop.f32.mrb[0].mxu0
    %v173 = vadd.f32 %v68, %v172
    %v174 = vpop.f32.mrb[0].mxu0
    %v175 = vadd.f32 %v64, %v174
    %v176 = vpop.f32.mrb[0].mxu0
    %v177 = vadd.f32 %v68, %v176
    %178 = vmatprep.mubr.bf16.mxu0 0
    %179 = vmatmul.mubr.bf16.gmra.mrb[0].mxu0 %v116
    %v180 = vpop.f32.mrb[0].mxu0
    %v181 = vadd.f32 %v64, %v180
    %v182 = vpop.f32.mrb[0].mxu0
    %v183 = vadd.f32 %v68, %v182
    %v184 = vpop.f32.mrb[0].mxu0
    %v185 = vadd.f32 %v64, %v184
    %v186 = vpop.f32.mrb[0].mxu0
    %v187 = vadd.f32 %v68, %v186
    %188 = vmatprep.mubr.bf16.mxu0 0
    %189 = vmatmul.mubr.bf16.gmra.mrb[0].mxu0 %v119
    %v190 = vpop.f32.mrb[0].mxu0
    %v191 = vadd.f32 %v64, %v190
    %v192 = vpop.f32.mrb[0].mxu0
    %v193 = vadd.f32 %v68, %v192
    %v194 = vpop.f32.mrb[0].mxu0
    %v195 = vadd.f32 %v64, %v194
    %v196 = vpop.f32.mrb[0].mxu0
    %v197 = vadd.f32 %v68, %v196
    %198 = vmatprep.mubr.bf16.mxu0 0
    %199 = vmatmul.mubr.bf16.gmra.mrb[0].mxu0 %v122
    %v200 = vpop.f32.mrb[0].mxu0
    %v201 = vadd.f32 %v64, %v200
    %v202 = vpop.f32.mrb[0].mxu0
    %v203 = vadd.f32 %v68, %v202
    %v204 = vpop.f32.mrb[0].mxu0
    %v205 = vadd.f32 %v64, %v204
    %v206 = vpop.f32.mrb[0].mxu0
    %v207 = vadd.f32 %v68, %v206
    %208 = vmatprep.mubr.bf16.mxu0 0
    %209 = vmatmul.mubr.bf16.gmra.mrb[0].mxu0 %v125
    %v210 = vpop.f32.mrb[0].mxu0
    %v211 = vadd.f32 %v64, %v210
    %v212 = vpop.f32.mrb[0].mxu0
    %v213 = vadd.f32 %v68, %v212
    %v214 = vpop.f32.mrb[0].mxu0
    %v215 = vadd.f32 %v64, %v214
    %v216 = vpop.f32.mrb[0].mxu0
    %v217 = vadd.f32 %v68, %v216
    %218 = vmatprep.mubr.bf16.mxu0 0
    %219 = vmatmul.mubr.bf16.gmra.mrb[0].mxu0 %v128
    %v220 = vpop.f32.mrb[0].mxu0
    %v221 = vadd.f32 %v64, %v220
    %v222 = vpop.f32.mrb[0].mxu0
    %v223 = vadd.f32 %v68, %v222
    %v224 = vpop.f32.mrb[0].mxu0
    %v225 = vadd.f32 %v64, %v224
    %v226 = vpop.f32.mrb[0].mxu0
    %v227 = vadd.f32 %v68, %v226
    %228 = vmatprep.mubr.bf16.mxu0 0
    %229 = vmatmul.mubr.bf16.gmra.mrb[0].mxu0 %v131
    %v230 = vpop.f32.mrb[0].mxu0
    %v231 = vadd.f32 %v64, %v230
    %v232 = vpop.f32.mrb[0].mxu0
    %v233 = vadd.f32 %v68, %v232
    %v234 = vpop.f32.mrb[0].mxu0
    %v235 = vadd.f32 %v64, %v234
    %v236 = vpop.f32.mrb[0].mxu0
    %v237 = vadd.f32 %v68, %v236
    %238 = vmatprep.mubr.bf16.mxu0 0
    %239 = vmatmul.mubr.bf16.gmra.mrb[0].mxu0 %v134
    %v240 = vpop.f32.mrb[0].mxu0
    %v241 = vadd.f32 %v64, %v240
    %v242 = vpop.f32.mrb[0].mxu0
    %v243 = vadd.f32 %v68, %v242
    %v244 = vpop.f32.mrb[0].mxu0
    %v245 = vadd.f32 %v64, %v244
    %v246 = vpop.f32.mrb[0].mxu0
    %v247 = vadd.f32 %v68, %v246
    %248 = vdwg.mxu0
    %v249 = vtanh.pop %v171
    %v250 = vtanh.pop %v175
    %v251 = vtanh.pop %v181
    %v252 = vtanh.pop %v185
    %v253 = vtanh.pop %v191
    %v254 = vtanh.pop %v195
    %v255 = vtanh.pop %v201
    %v256 = vtanh.pop %v205
    %v257 = vtanh.pop %v211
    %v258 = vtanh.pop %v215
    %v259 = vtanh.pop %v221
    %v260 = vtanh.pop %v225
    %v261 = vtanh.pop %v231
    %v262 = vtanh.pop %v235
    %v263 = vtanh.pop %v241
    %v264 = vtanh.pop %v245
    %v265 = vxor.u32 %v173, 2147483648
    %v266 = vxor.u32 %v177, 2147483648
    %v267 = vxor.u32 %v183, 2147483648
    %v268 = vxor.u32 %v187, 2147483648
    %v269 = vxor.u32 %v193, 2147483648
    %v270 = vxor.u32 %v197, 2147483648
    %v271 = vxor.u32 %v203, 2147483648
    %v272 = vxor.u32 %v207, 2147483648
    %v273 = vxor.u32 %v213, 2147483648
    %v274 = vxor.u32 %v217, 2147483648
    %v275 = vxor.u32 %v223, 2147483648
    %v276 = vxor.u32 %v227, 2147483648
    %v277 = vxor.u32 %v233, 2147483648
    %v278 = vxor.u32 %v237, 2147483648
    %v279 = vxor.u32 %v243, 2147483648
    %v280 = vxor.u32 %v247, 2147483648
    %v281 = vmul.f32 %v265, 1.442695
    %v282 = vpow.pop %v281
    %v283 = vmul.f32 %v266, 1.442695
    %v284 = vpow.pop %v283
    %v285 = vmul.f32 %v267, 1.442695
    %v286 = vpow.pop %v285
    %v287 = vmul.f32 %v268, 1.442695
    %v288 = vpow.pop %v287
    %v289 = vmul.f32 %v269, 1.442695
    %v290 = vpow.pop %v289
    %v291 = vmul.f32 %v270, 1.442695
    %v292 = vpow.pop %v291
    %v293 = vmul.f32 %v271, 1.442695
    %v294 = vpow.pop %v293
    %v295 = vmul.f32 %v272, 1.442695
    %v296 = vpow.pop %v295
    %v297 = vmul.f32 %v273, 1.442695
    %v298 = vpow.pop %v297
    %v299 = vmul.f32 %v274, 1.442695
    %v300 = vpow.pop %v299
    %v301 = vmul.f32 %v275, 1.442695
    %v302 = vpow.pop %v301
    %v303 = vmul.f32 %v276, 1.442695
    %v304 = vpow.pop %v303
    %v305 = vmul.f32 %v277, 1.442695
    %v306 = vpow.pop %v305
    %v307 = vmul.f32 %v278, 1.442695
    %v308 = vpow.pop %v307
    %v309 = vmul.f32 %v279, 1.442695
    %v310 = vpow.pop %v309
    %v311 = vmul.f32 %v280, 1.442695
    %v312 = vpow.pop %v311
    %v313 = vadd.f32 %v282, 1.0
    %v314 = vadd.f32 %v284, 1.0
    %v315 = vadd.f32 %v286, 1.0
    %v316 = vadd.f32 %v288, 1.0
    %v317 = vadd.f32 %v290, 1.0
    %v318 = vadd.f32 %v292, 1.0
    %v319 = vadd.f32 %v294, 1.0
    %v320 = vadd.f32 %v296, 1.0
    %v321 = vadd.f32 %v298, 1.0
    %v322 = vadd.f32 %v300, 1.0
    %v323 = vadd.f32 %v302, 1.0
    %v324 = vadd.f32 %v304, 1.0
    %v325 = vadd.f32 %v306, 1.0
    %v326 = vadd.f32 %v308, 1.0
    %v327 = vadd.f32 %v310, 1.0
    %v328 = vadd.f32 %v312, 1.0
    %v329 = vrcp.pop %v313
    %v330 = vmul.f32 1.0, %v329
    %v331 = vrcp.pop %v314
    %v332 = vmul.f32 1.0, %v331
    %v333 = vrcp.pop %v315
    %v334 = vmul.f32 1.0, %v333
    %v335 = vrcp.pop %v316
    %v336 = vmul.f32 1.0, %v335
    %v337 = vrcp.pop %v317
    %v338 = vmul.f32 1.0, %v337
    %v339 = vrcp.pop %v318
    %v340 = vmul.f32 1.0, %v339
    %v341 = vrcp.pop %v319
    %v342 = vmul.f32 1.0, %v341
    %v343 = vrcp.pop %v320
    %v344 = vmul.f32 1.0, %v343
    %v345 = vrcp.pop %v321
    %v346 = vmul.f32 1.0, %v345
    %v347 = vrcp.pop %v322
    %v348 = vmul.f32 1.0, %v347
    %v349 = vrcp.pop %v323
    %v350 = vmul.f32 1.0, %v349
    %v351 = vrcp.pop %v324
    %v352 = vmul.f32 1.0, %v351
    %v353 = vrcp.pop %v325
    %v354 = vmul.f32 1.0, %v353
    %v355 = vrcp.pop %v326
    %v356 = vmul.f32 1.0, %v355
    %v357 = vrcp.pop %v327
    %v358 = vmul.f32 1.0, %v357
    %v359 = vrcp.pop %v328
    %v360 = vmul.f32 1.0, %v359
    %v361 = vmul.f32 %v249, %v330
    %v362 = vmul.f32 %v250, %v332
    %v363 = vmul.f32 %v251, %v334
    %v364 = vmul.f32 %v252, %v336
    %v365 = vmul.f32 %v253, %v338
    %v366 = vmul.f32 %v254, %v340
    %v367 = vmul.f32 %v255, %v342
    %v368 = vmul.f32 %v256, %v344
    %v369 = vmul.f32 %v257, %v346
    %v370 = vmul.f32 %v258, %v348
    %v371 = vmul.f32 %v259, %v350
    %v372 = vmul.f32 %v260, %v352
    %v373 = vmul.f32 %v261, %v354
    %v374 = vmul.f32 %v262, %v356
    %v375 = vmul.f32 %v263, %v358
    %v376 = vmul.f32 %v264, %v360
    %v377 = vld [vmem:[%s3 + $0x1] sm:$0x1]
    %v378 = vld [vmem:[%s4] sm:$0xff]
    %379 = vmatprep.subr.mxu0 0.0
    %380 = vmatpush1.xpose.msra.mxu0 %v361
    %381 = vmatprep.subr.mxu0 0.0
    %382 = vmatpush1.xpose.msra.mxu0 %v362
    %383 = vmatprep.subr.mxu0 0.0
    %384 = vmatpush1.xpose.msra.mxu0 %v363
    %385 = vmatprep.subr.mxu0 0.0
    %386 = vmatpush1.xpose.msra.mxu0 %v364
    %387 = vmatprep.subr.mxu0 0.0
    %388 = vmatpush1.xpose.msra.mxu0 %v365
    %389 = vmatprep.subr.mxu0 0.0
    %390 = vmatpush1.xpose.msra.mxu0 %v366
    %391 = vmatprep.subr.mxu0 0.0
    %392 = vmatpush1.xpose.msra.mxu0 %v367
    %393 = vmatprep.subr.mxu0 0.0
    %394 = vmatpush1.xpose.msra.mxu0 %v368
    %395 = vmatprep.subr.mxu0 0.0
    %396 = vmatpush1.xpose.msra.mxu0 %v369
    %397 = vmatprep.subr.mxu0 0.0
    %398 = vmatpush1.xpose.msra.mxu0 %v370
    %399 = vmatprep.subr.mxu0 0.0
    %400 = vmatpush1.xpose.msra.mxu0 %v371
    %401 = vmatprep.subr.mxu0 0.0
    %402 = vmatpush1.xpose.msra.mxu0 %v372
    %403 = vmatprep.subr.mxu0 0.0
    %404 = vmatpush1.xpose.msra.mxu0 %v373
    %405 = vmatprep.subr.mxu0 0.0
    %406 = vmatpush1.xpose.msra.mxu0 %v374
    %407 = vmatprep.subr.mxu0 0.0
    %408 = vmatpush1.xpose.msra.mxu0 %v375
    %409 = vmatprep.subr.mxu0 0.0
    %410 = vmatpush1.xpose.msra.mxu0 %v376
    %411 = vmatprep.subr.mxu0 0.0
    %412 = vmatpush1.xpose.msra.mxu0 0.0
    %413 = vmatprep.subr.mxu0 0.0
    %414 = vmatpush1.xpose.msra.mxu0 0.0
    %415 = vmatprep.subr.mxu0 0.0
    %416 = vmatpush1.xpose.msra.mxu0 0.0
    %417 = vmatprep.subr.mxu0 0.0
    %418 = vmatpush1.xpose.msra.mxu0 0.0
    %419 = vmatprep.subr.mxu0 0.0
    %420 = vmatpush1.xpose.msra.mxu0 0.0
    %421 = vmatprep.subr.mxu0 0.0
    %422 = vmatpush1.xpose.msra.mxu0 0.0
    %423 = vmatprep.subr.mxu0 0.0
    %424 = vmatpush1.xpose.msra.mxu0 0.0
    %425 = vmatprep.subr.mxu0 0.0
    %426 = vmatpush1.xpose.msra.mxu0 0.0
    %427 = vmatprep.subr.mxu0 0.0
    %428 = vmatpush1.xpose.msra.mxu0 0.0
    %429 = vmatprep.subr.mxu0 0.0
    %430 = vmatpush1.xpose.msra.mxu0 0.0
    %431 = vmatprep.subr.mxu0 0.0
    %432 = vmatpush1.xpose.msra.mxu0 0.0
    %433 = vmatprep.subr.mxu0 0.0
    %434 = vmatpush1.xpose.msra.mxu0 0.0
    %435 = vmatprep.subr.mxu0 0.0
    %436 = vmatpush1.xpose.msra.mxu0 0.0
    %437 = vmatprep.subr.mxu0 0.0
    %438 = vmatpush1.xpose.msra.mxu0 0.0
    %439 = vmatprep.subr.mxu0 0.0
    %440 = vmatpush1.xpose.msra.mxu0 0.0
    %441 = vmatprep.subr.mxu0 0.0
    %442 = vmatpush1.xpose.msra.mxu0 0.0
    %443 = vmatprep.mubr.f32.mxu0 0.0
    %444 = vmatmul.mubr.f32.gmra.mrb[0].mxu0 %v378
    %v445 = vpop.f32.mrb[0].mxu0
    %v446 = vadd.f32 0.0, %v445
    %v447 = vpop.f32.mrb[0].mxu0
    %448 = vdwg.mxu0
    %450 = vset.pattern.permute.xlu0 0
    %451 = vperm.xlu0 %450, %v377
    %v452 = vpop.permute.xlu0 %451
    %v455 = vunpack.c.l.s4 269488144
    %v456 = vunpack.c.0.s8 %v455
    %v457 = vlaneseq
    %v458 = vshrl.u32 %v457, 7
    %v459 = vsub.s32 %v456, %v458
    %v460 = vrot.slane %v452, %v459
    %v461 = vadd.f32 %v446, %v460
    %v462 = vld [vmem:[%s1] sm:$0x1]
    %v463 = vadd.f32 %v461, %v462
    %v464 = vld [vmem:[%s5] sm:$0xff]
    %v466 = vsel %vm111, %v464, 0
    %v469 = vsel %vm111, %v27, 0
    %v472 = vsel %vm111, %v28, 0
    %v475 = vsel %vm111, %v29, 0
    %v478 = vsel %vm111, %v30, 0
    %v481 = vsel %vm111, %v31, 0
    %v484 = vsel %vm111, %v32, 0
    %v487 = vsel %vm111, %v33, 0
    %v490 = vsel %vm111, %v34, 0
    %v493 = vsel %vm111, %v35, 0
    %v496 = vsel %vm111, %v36, 0
    %v499 = vsel %vm111, %v37, 0
    %v502 = vsel %vm111, %v38, 0
    %v505 = vsel %vm111, %v39, 0
    %v508 = vsel %vm111, %v40, 0
    %v511 = vsel %vm111, %v41, 0
    %v514 = vsel %vm111, %v42, 0
    %516 = vmatprep.subr.mxu0 0.0
    %517 = vmatpush1.xpose.msra.mxu0 %v469
    %518 = vmatprep.subr.mxu0 0.0
    %519 = vmatpush1.xpose.msra.mxu0 %v472
    %520 = vmatprep.subr.mxu0 0.0
    %521 = vmatpush1.xpose.msra.mxu0 %v475
    %522 = vmatprep.subr.mxu0 0.0
    %523 = vmatpush1.xpose.msra.mxu0 %v478
    %524 = vmatprep.subr.mxu0 0.0
    %525 = vmatpush1.xpose.msra.mxu0 %v481
    %526 = vmatprep.subr.mxu0 0.0
    %527 = vmatpush1.xpose.msra.mxu0 %v484
    %528 = vmatprep.subr.mxu0 0.0
    %529 = vmatpush1.xpose.msra.mxu0 %v487
    %530 = vmatprep.subr.mxu0 0.0
    %531 = vmatpush1.xpose.msra.mxu0 %v490
    %532 = vmatprep.subr.mxu0 0.0
    %533 = vmatpush1.xpose.msra.mxu0 %v493
    %534 = vmatprep.subr.mxu0 0.0
    %535 = vmatpush1.xpose.msra.mxu0 %v496
    %536 = vmatprep.subr.mxu0 0.0
    %537 = vmatpush1.xpose.msra.mxu0 %v499
    %538 = vmatprep.subr.mxu0 0.0
    %539 = vmatpush1.xpose.msra.mxu0 %v502
    %540 = vmatprep.subr.mxu0 0.0
    %541 = vmatpush1.xpose.msra.mxu0 %v505
    %542 = vmatprep.subr.mxu0 0.0
    %543 = vmatpush1.xpose.msra.mxu0 %v508
    %544 = vmatprep.subr.mxu0 0.0
    %545 = vmatpush1.xpose.msra.mxu0 %v511
    %546 = vmatprep.subr.mxu0 0.0
    %547 = vmatpush1.xpose.msra.mxu0 %v514
    %548 = vmatprep.subr.mxu0 0.0
    %549 = vmatpush1.xpose.msra.mxu0 0.0
    %550 = vmatprep.subr.mxu0 0.0
    %551 = vmatpush1.xpose.msra.mxu0 0.0
    %552 = vmatprep.subr.mxu0 0.0
    %553 = vmatpush1.xpose.msra.mxu0 0.0
    %554 = vmatprep.subr.mxu0 0.0
    %555 = vmatpush1.xpose.msra.mxu0 0.0
    %556 = vmatprep.subr.mxu0 0.0
    %557 = vmatpush1.xpose.msra.mxu0 0.0
    %558 = vmatprep.subr.mxu0 0.0
    %559 = vmatpush1.xpose.msra.mxu0 0.0
    %560 = vmatprep.subr.mxu0 0.0
    %561 = vmatpush1.xpose.msra.mxu0 0.0
    %562 = vmatprep.subr.mxu0 0.0
    %563 = vmatpush1.xpose.msra.mxu0 0.0
    %564 = vmatprep.subr.mxu0 0.0
    %565 = vmatpush1.xpose.msra.mxu0 0.0
    %566 = vmatprep.subr.mxu0 0.0
    %567 = vmatpush1.xpose.msra.mxu0 0.0
    %568 = vmatprep.subr.mxu0 0.0
    %569 = vmatpush1.xpose.msra.mxu0 0.0
    %570 = vmatprep.subr.mxu0 0.0
    %571 = vmatpush1.xpose.msra.mxu0 0.0
    %572 = vmatprep.subr.mxu0 0.0
    %573 = vmatpush1.xpose.msra.mxu0 0.0
    %574 = vmatprep.subr.mxu0 0.0
    %575 = vmatpush1.xpose.msra.mxu0 0.0
    %576 = vmatprep.subr.mxu0 0.0
    %577 = vmatpush1.xpose.msra.mxu0 0.0
    %578 = vmatprep.subr.mxu0 0.0
    %579 = vmatpush1.xpose.msra.mxu0 0.0
    %580 = vmatprep.mubr.f32.mxu0 0.0
    %581 = vmatmul.mubr.f32.gmra.mrb[0].mxu0 %v466
    %v582 = vpop.f32.mrb[0].mxu0
    %v583 = vadd.f32 0.0, %v582
    %v584 = vpop.f32.mrb[0].mxu0
    %585 = vdwg.mxu0
    %586 = vst [vmem:[#allocation3] sm:$0x1] %v463
    %587 = vst [vmem:[#allocation2] sm:$0x1] %v583
    %p588 = scmp.eq.s32.totalorder 0, 0
    // Predicated region
    $region26: #{gabmil_forward.1} parent=1 // pred_check
      %p589 = pneg %p588
    $region27: #{gabmil_forward.1} parent=1 // pred_check_branch
      %591 = sbr.rel (%p589) target = $region29
    $region28: #{gabmil_forward.1} parent=1 // pred_region
      %v592 = vld [vmem:[#allocation3] sm:$0x1]
      %vm593 = vcmask 1040384
      %v594 = vsel %vm593, %v592, -inf
      %595 = vmax.xlane.f32.xlu0 %v594
      %v596 = vpop.xlane.xlu0 %595
      %v597 = vsub.f32 %v592, %v596
      %v598 = vmul.f32 %v597, 1.442695
      %v599 = vpow.pop %v598
      %v600 = vsel %vm593, %v599, 0.0
      %601 = vadd.xlane.f32.xlu0 %v600
      %v602 = vpop.xlane.xlu0 %601
      %v603 = vadd.f32 %v602, 0.0
      %v604 = vrcp.pop %v603
      %v605 = vmul.f32 %v599, %v604
      %606 = vst [vmem:[#allocation3] sm:$0x1] %v605
      %v607 = vld [vmem:[#allocation2] sm:$0x1]
      %v608 = vmul.f32 %v599, %v607
      %v609 = vsel %vm593, %v608, 0.0
      %610 = vadd.xlane.f32.xlu0 %v609
      %v611 = vpop.xlane.xlu0 %610
      %v612 = vadd.f32 %v611, 0.0
      %v613 = vrcp.pop %v603
      %v614 = vmul.f32 %v612, %v613
      %v615 = vlaneseq
      %v616 = vshrl.u32 %v615, 7
      %v617 = vsub.s32 0, %v616
      %v618 = vrot.slane %v377, %v617
      %619 = vrot.lane.b32.xlu0 %v618, 127
      %v620 = vpop.permute.xlu0 %619
      %v622 = vadd.f32 %v614, %v620
      %v623 = vxor.u32 %v622, 2147483648
      %v624 = vmul.f32 %v623, 1.442695
      %v625 = vpow.pop %v624
      %v626 = vadd.f32 %v625, 1.0
      %v627 = vrcp.pop %v626
      %v628 = vmul.f32 1.0, %v627
      %vm629 = vcmp.ge.f32.partialorder %v628, 0.5
      %v630 = vsel %vm629, 1, 0
      %v631 = vcvt.s32.f32 %v630
      %v632 = vlaneseq
      %v633 = vand.u32 %v632, 127
      %vm634 = vcmp.eq.s32.totalorder %v633, 0
      %vm635 = vcmp.eq.s32.totalorder %v633, 1
      %637 = vset.pattern.permute.xlu0 0
      %638 = vperm.xlu0 %637, %v631
      %v639 = vpop.permute.xlu0 %638
      %v641 = vsel %vm635, %v639, 0.0
      %643 = vset.pattern.permute.xlu0 0
      %644 = vperm.xlu0 %643, %v628
      %v645 = vpop.permute.xlu0 %644
      %v647 = vsel %vm634, %v645, %v641
      %648 = vst [vmem:[%s7] sm:$0x1] %v647
    $region29: #{gabmil_forward.1} parent=1 // pred_fallthru
      _
    // Predicated region
    $region30: #{gabmil_forward.1} parent=1 // pred_check
      _
    $region31: #{gabmil_forward.1} parent=1 // pred_check_branch
      %650 = sbr.rel (0) target = $region33
    $region32: #{gabmil_forward.1} parent=1 // pred_region
      %s652 = ssub.s32 16, 16
      %653 = vsyncadd [#allocation4], %s652
      %s655 = sshll.u32 [#allocation3], 4
      %s656 = int_to_ptr.vmem [resolvable:$true] %s655
      %658 = dma.vmem_to_hbm [thread:$0]  %s656, 16, %s6, [#allocation4]
    $region33: #{gabmil_forward.1} parent=1 // pred_fallthru
      _
    // Predicated region
    $region34: #{gabmil_forward.1} parent=1 // pred_check
      _
    $region35: #{gabmil_forward.1} parent=1 // pred_check_branch
      %660 = sbr.rel (0) target = $region37
    $region36: #{gabmil_forward.1} parent=1 // pred_region
      _
    $region37: #{gabmil_forward.1} parent=1 // pred_fallthru
      _
    // Predicated region
    $region38: #{gabmil_forward.1} parent=1 // pred_check
      _
    $region39: #{gabmil_forward.1} parent=1 // pred_check_branch
      %662 = sbr.rel (0) target = $region41
    $region40: #{gabmil_forward.1} parent=1 // pred_region
      %663 = dma.done [#allocation4], 16
    $region41: #{gabmil_forward.1} parent=1 // pred_fallthru
      _
    // Predicated region
    $region42: #{gabmil_forward.1} parent=1 // pred_check
      _
    $region43: #{gabmil_forward.1} parent=1 // pred_check_branch
      %665 = sbr.rel (0) target = $region45
    $region44: #{gabmil_forward.1} parent=1 // pred_region
      _
    $region45: #{gabmil_forward.1} parent=1 // pred_fallthru
      _
    %666 = vsyncpa [#allocation4], 1

</llo_original>
